<compile_context>
chip_gen: v7x
topology: tpu7x:2x2x1
jax: 0.10.0
libtpu: 0.0.40
codegen_flags: <defaults>
</compile_context>

<pallas_src>
import jax
import jax.numpy as jnp
from jax.experimental import pallas as pl
from jax.experimental.pallas import tpu as pltpu


def _round_up(n, m):
    return ((n + m - 1) // m) * m


def _num_tensorcores():
    """Best-effort TensorCore-per-device count (v7x has 2; v5e/v6e have 1)."""
    try:
        return max(1, int(getattr(jax.devices()[0], "num_cores", 1)))
    except Exception:
        return 1


def mlp_kernel(x_ref, w1_ref, b1_ref, w2_ref, b2_ref, o_ref):
    """One batch-tile of the fused MLP (all f32).

    x_ref : (tm, F)   w1_ref: (F, H)   b1_ref: (1, H)
    w2_ref: (H, O)    b2_ref: (1, O)   o_ref : (tm, O)
    """
    # hidden = relu(x @ W1 + b1): MXU matmul with f32 accumulation,
    # bias add + ReLU on the VPU.
    h = jnp.dot(x_ref[...], w1_ref[...], preferred_element_type=jnp.float32)
    h = jnp.maximum(h + b1_ref[...], 0.0)

    # out = hidden @ W2 + b2
    y = jnp.dot(h, w2_ref[...], preferred_element_type=jnp.float32)
    o_ref[...] = (y + b2_ref[...]).astype(o_ref.dtype)


def net_forward(x, w1, b1, w2, b2, *, tm=None):
    """Fused MLP forward pass (same semantics as the PyTorch Net.forward).

    x : (batch, n_features) f32
    w1: (n_features, n_hidden), b1: (1, n_hidden)  -- Linear1 (W stored transposed)
    w2: (n_hidden, n_output),   b2: (1, n_output)  -- Linear2
    Returns (batch, n_output) f32.
    """
    batch, n_features = x.shape
    n_hidden = w1.shape[1]
    n_output = w2.shape[1]

    # Accept torch-style 1-D biases too (reshape is free, but callers should
    # store them (1, n) so the hot path does no prep at all).
    if b1.ndim == 1:
        b1 = b1.reshape(1, -1)
    if b2.ndim == 1:
        b2 = b2.reshape(1, -1)

    # --- batch-tile sizing -------------------------------------------------
    # One grid step per TensorCore (so v7x uses both TCs via "parallel"),
    # capped at 2048 rows/step for large batches so per-step HBM traffic
    # comfortably amortizes the ~0.35 us fixed pipeline overhead.
    if tm is None:
        steps = max(_num_tensorcores(), pl.cdiv(batch, 2048))
        tm = _round_up(pl.cdiv(batch, steps), 8)
    else:
        tm = _round_up(max(1, min(tm, batch)), 8)

    bp = _round_up(batch, tm)
    x_in = x if bp == batch else jnp.pad(x, ((0, bp - batch), (0, 0)))
    grid = (bp // tm,)

    cost = pl.CostEstimate(
        flops=2 * batch * (n_features * n_hidden + n_hidden * n_output),
        transcendentals=0,
        bytes_accessed=4 * (bp * n_features + n_features * n_hidden + n_hidden
                            + n_hidden * n_output + n_output + bp * n_output),
    )

    out = pl.pallas_call(
        mlp_kernel,
        out_shape=jax.ShapeDtypeStruct((bp, n_output), jnp.float32),
        grid_spec=pltpu.PrefetchScalarGridSpec(
            num_scalar_prefetch=0,
            grid=grid,
            in_specs=[
                # x: tiled over batch, pipelined / double-buffered.
                pl.BlockSpec((tm, n_features), lambda i: (i, 0)),
                # Weights / biases: same block every step -> VMEM-resident.
                pl.BlockSpec((n_features, n_hidden), lambda i: (0, 0)),
                pl.BlockSpec((1, n_hidden), lambda i: (0, 0)),
                pl.BlockSpec((n_hidden, n_output), lambda i: (0, 0)),
                pl.BlockSpec((1, n_output), lambda i: (0, 0)),
            ],
            out_specs=pl.BlockSpec((tm, n_output), lambda i: (i, 0)),
        ),
        compiler_params=pltpu.CompilerParams(
            # Batch tiles are independent -> shard across TensorCores (v7x).
            dimension_semantics=("parallel",),
        ),
        cost_estimate=cost,
    )(x_in, w1, b1, w2, b2)

    return out if bp == batch else out[:batch]


def init_linear_params(key, in_features, out_features, dtype=jnp.float32):
    """Deterministic init mirroring torch.nn.Linear's default
    U(-1/sqrt(fan_in), 1/sqrt(fan_in)).  W stored (in_features, out_features);
    bias stored (1, out_features) so the forward path needs no reshaping."""
    k_w, k_b = jax.random.split(key)
    bound = 1.0 / jnp.sqrt(jnp.float32(in_features))
    w = jax.random.uniform(k_w, (in_features, out_features), dtype,
                           minval=-bound, maxval=bound)
    b = jax.random.uniform(k_b, (1, out_features), dtype,
                           minval=-bound, maxval=bound)
    return w, b


if __name__ == "__main__":
    # Net(n_features, n_hidden, n_output); batch large enough to exercise the
    # batch tiling while staying tiny (~64 KB of input).
    batch, n_features, n_hidden, n_output = 512, 32, 64, 16

    key = jax.random.PRNGKey(0)
    k_x, k_l1, k_l2 = jax.random.split(key, 3)

    x = jax.random.normal(k_x, (batch, n_features), jnp.float32)
    w1, b1 = init_linear_params(k_l1, n_features, n_hidden)
    w2, b2 = init_linear_params(k_l2, n_hidden, n_output)

    out = net_forward(x, w1, b1, w2, b2)
    jax.block_until_ready(out)

    # Reference check against plain JAX (f32).
    ref = jnp.maximum(x @ w1 + b1, 0.0) @ w2 + b2
    assert out.shape == (batch, n_output)
    assert jnp.allclose(out, ref, atol=2e-2, rtol=2e-2), \
        float(jnp.max(jnp.abs(out - ref)))

    print("KERNEL_OK")
</pallas_src>

<mosaic_0001>
module attributes {stable_mosaic.version = 11 : i64} {
  func.func @mlp_kernel(%arg0: i32, %arg1: memref<512x32xf32, #tpu.memory_space<vmem>>, %arg2: memref<32x64xf32, #tpu.memory_space<vmem>>, %arg3: memref<1x64xf32, #tpu.memory_space<vmem>>, %arg4: memref<64x16xf32, #tpu.memory_space<vmem>>, %arg5: memref<1x16xf32, #tpu.memory_space<vmem>>, %arg6: memref<512x16xf32, #tpu.memory_space<vmem>>) attributes {dimension_semantics = [#tpu.dimension_semantics<parallel>], iteration_bounds = array<i64: 1>, scalar_prefetch = 0 : i64, scratch_operands = 0 : i64, tpu.core_type = #tpu.core_type<tc>, window_params = [{transform_indices = @transform_0, window_bounds = array<i64: 512, 32>}, {pipeline_mode = #tpu.pipeline_mode<synchronous>, transform_indices = @transform_1, window_bounds = array<i64: 32, 64>}, {pipeline_mode = #tpu.pipeline_mode<synchronous>, transform_indices = @transform_2, window_bounds = array<i64: 1, 64>}, {pipeline_mode = #tpu.pipeline_mode<synchronous>, transform_indices = @transform_3, window_bounds = array<i64: 64, 16>}, {pipeline_mode = #tpu.pipeline_mode<synchronous>, transform_indices = @transform_4, window_bounds = array<i64: 1, 16>}, {transform_indices = @transform_5, window_bounds = array<i64: 512, 16>}]} {
    %c0 = arith.constant 0 : index
    %c0_0 = arith.constant 0 : index
    %0 = vector.load %arg1[%c0, %c0_0] : memref<512x32xf32, #tpu.memory_space<vmem>>, vector<512x32xf32>
    %c0_1 = arith.constant 0 : index
    %c0_2 = arith.constant 0 : index
    %1 = vector.load %arg2[%c0_1, %c0_2] : memref<32x64xf32, #tpu.memory_space<vmem>>, vector<32x64xf32>
    %cst = arith.constant dense<0.000000e+00> : vector<512x64xf32>
    %2 = tpu.matmul %0, %1, %cst {dimension_numbers = #tpu.dot_dimension_numbers<[1], [0], [0], [1], [0, 0, 1, 1], [], []>} : vector<512x32xf32>, vector<32x64xf32>, vector<512x64xf32> -> vector<512x64xf32>
    %c0_3 = arith.constant 0 : index
    %c0_4 = arith.constant 0 : index
    %3 = vector.load %arg3[%c0_3, %c0_4] : memref<1x64xf32, #tpu.memory_space<vmem>>, vector<1x64xf32>
    %4 = vector.broadcast %3 : vector<1x64xf32> to vector<512x64xf32>
    %5 = arith.addf %2, %4 : vector<512x64xf32>
    %cst_5 = arith.constant 0.000000e+00 : f32
    %6 = vector.broadcast %cst_5 : f32 to vector<512x64xf32>
    %7 = arith.maximumf %5, %6 : vector<512x64xf32>
    %c0_6 = arith.constant 0 : index
    %c0_7 = arith.constant 0 : index
    %8 = vector.load %arg4[%c0_6, %c0_7] : memref<64x16xf32, #tpu.memory_space<vmem>>, vector<64x16xf32>
    %cst_8 = arith.constant dense<0.000000e+00> : vector<512x16xf32>
    %9 = tpu.matmul %7, %8, %cst_8 {dimension_numbers = #tpu.dot_dimension_numbers<[1], [0], [0], [1], [0, 0, 1, 1], [], []>} : vector<512x64xf32>, vector<64x16xf32>, vector<512x16xf32> -> vector<512x16xf32>
    %c0_9 = arith.constant 0 : index
    %c0_10 = arith.constant 0 : index
    %10 = vector.load %arg5[%c0_9, %c0_10] : memref<1x16xf32, #tpu.memory_space<vmem>>, vector<1x16xf32>
    %11 = vector.broadcast %10 : vector<1x16xf32> to vector<512x16xf32>
    %12 = arith.addf %9, %11 : vector<512x16xf32>
    %c0_11 = arith.constant 0 : index
    %c0_12 = arith.constant 0 : index
    %13 = vector.load %arg6[%c0_11, %c0_12] : memref<512x16xf32, #tpu.memory_space<vmem>>, vector<512x16xf32>
    tpu.vector_store %arg6[%c0_11, %c0_12], %12 {strides = array<i32>} : memref<512x16xf32, #tpu.memory_space<vmem>>, vector<512x16xf32>,
    return
  }
  func.func @transform_0(%arg0: i32) -> (i32, i32) {
    %c0_i32 = arith.constant 0 : i32
    %c0_i32_0 = arith.constant 0 : i32
    return %arg0, %c0_i32 : i32, i32
  }
  func.func @transform_1(%arg0: i32) -> (i32, i32) {
    %c0_i32 = arith.constant 0 : i32
    %c0_i32_0 = arith.constant 0 : i32
    %c0_i32_1 = arith.constant 0 : i32
    return %c0_i32, %c0_i32_0 : i32, i32
  }
  func.func @transform_2(%arg0: i32) -> (i32, i32) {
    %c0_i32 = arith.constant 0 : i32
    %c0_i32_0 = arith.constant 0 : i32
    %c0_i32_1 = arith.constant 0 : i32
    return %c0_i32, %c0_i32_0 : i32, i32
  }
  func.func @transform_3(%arg0: i32) -> (i32, i32) {
    %c0_i32 = arith.constant 0 : i32
    %c0_i32_0 = arith.constant 0 : i32
    %c0_i32_1 = arith.constant 0 : i32
    return %c0_i32, %c0_i32_0 : i32, i32
  }
  func.func @transform_4(%arg0: i32) -> (i32, i32) {
    %c0_i32 = arith.constant 0 : i32
    %c0_i32_0 = arith.constant 0 : i32
    %c0_i32_1 = arith.constant 0 : i32
    return %c0_i32, %c0_i32_0 : i32, i32
  }
  func.func @transform_5(%arg0: i32) -> (i32, i32) {
    %c0_i32 = arith.constant 0 : i32
    %c0_i32_0 = arith.constant 0 : i32
    return %arg0, %c0_i32 : i32, i32
  }
}

</mosaic_0001>

<llo_original>
// kernel: tpu_custom_call.1
$region0: #{tpu_custom_call.1}
  #allocation0 [shape = 'u32[]', space=smem, size = 0x4, offset = 0x4, fixed_abs, tag = 'smem constant byte address 0x4 - core index']
  #allocation1 [shape = 'u32[144,128]{1,0:T(1,128)}', space=vmem, size = 0x12000, scoped, tag = 'internal scratch']
  %s0 = inlined_call_operand.vmem [shape: f32[512,32], index: 0, kind: input, shape index: {}]
  %s1 = inlined_call_operand.vmem [shape: f32[32,64], index: 1, kind: input, shape index: {}]
  %s2 = inlined_call_operand.vmem [shape: f32[1,64], index: 2, kind: input, shape index: {}]
  %s3 = inlined_call_operand.vmem [shape: f32[64,16], index: 3, kind: input, shape index: {}]
  %s4 = inlined_call_operand.vmem [shape: f32[1,16], index: 4, kind: input, shape index: {}]
  %s5 = inlined_call_operand.vmem [shape: f32[512,16], index: 5, kind: output, shape index: {}]
  %s6 = sld [smem:[#allocation0]]
  $region30: #{tpu_custom_call.1} parent=0
    _
  %s8 = ssub.s32 1, %s6
  %s9 = scalar_select 0, %s8, %s6
  // Predicated region
  $region2: #{tpu_custom_call.1} parent=0 // pred_check
    _
  $region3: #{tpu_custom_call.1} parent=0 // pred_check_branch
    %11 = sbr.rel (0) target = $region5
  $region4: #{tpu_custom_call.1} parent=0 // pred_region
    _
  $region5: #{tpu_custom_call.1} parent=0 // pred_fallthru
    _
  // Predicated region
  $region6: #{tpu_custom_call.1} parent=0 // pred_check
    _
  $region7: #{tpu_custom_call.1} parent=0 // pred_check_branch
    %13 = sbr.rel (0) target = $region9
  $region8: #{tpu_custom_call.1} parent=0 // pred_region
    _
  $region9: #{tpu_custom_call.1} parent=0 // pred_fallthru
    _
  // Predicated region
  $region10: #{tpu_custom_call.1} parent=0 // pred_check
    _
  $region11: #{tpu_custom_call.1} parent=0 // pred_check_branch
    %15 = sbr.rel (0) target = $region13
  $region12: #{tpu_custom_call.1} parent=0 // pred_region
    _
  $region13: #{tpu_custom_call.1} parent=0 // pred_fallthru
    _
  // Predicated region
  $region14: #{tpu_custom_call.1} parent=0 // pred_check
    _
  $region15: #{tpu_custom_call.1} parent=0 // pred_check_branch
    %17 = sbr.rel (0) target = $region17
  $region16: #{tpu_custom_call.1} parent=0 // pred_region
    _
  $region17: #{tpu_custom_call.1} parent=0 // pred_fallthru
    _
  // Predicated region
  $region18: #{tpu_custom_call.1} parent=0 // pred_check
    _
  $region19: #{tpu_custom_call.1} parent=0 // pred_check_branch
    %19 = sbr.rel (0) target = $region21
  $region20: #{tpu_custom_call.1} parent=0 // pred_region
    _
  $region21: #{tpu_custom_call.1} parent=0 // pred_fallthru
    _
  %v20 = vld [vmem:[%s0] sm:$0xff]
  %v21 = vld [vmem:[%s0 + $0x8] sm:$0xff]
  %v22 = vld [vmem:[%s0 + $0x10] sm:$0xff]
  %v23 = vld [vmem:[%s0 + $0x18] sm:$0xff]
  %v24 = vld [vmem:[%s0 + $0x20] sm:$0xff]
  %v25 = vld [vmem:[%s0 + $0x28] sm:$0xff]
  %v26 = vld [vmem:[%s0 + $0x30] sm:$0xff]
  %v27 = vld [vmem:[%s0 + $0x38] sm:$0xff]
  %v28 = vld [vmem:[%s0 + $0x40] sm:$0xff]
  %v29 = vld [vmem:[%s0 + $0x48] sm:$0xff]
  %v30 = vld [vmem:[%s0 + $0x50] sm:$0xff]
  %v31 = vld [vmem:[%s0 + $0x58] sm:$0xff]
  %v32 = vld [vmem:[%s0 + $0x60] sm:$0xff]
  %v33 = vld [vmem:[%s0 + $0x68] sm:$0xff]
  %v34 = vld [vmem:[%s0 + $0x70] sm:$0xff]
  %v35 = vld [vmem:[%s0 + $0x78] sm:$0xff]
  %v36 = vld [vmem:[%s0 + $0x80] sm:$0xff]
  %v37 = vld [vmem:[%s0 + $0x88] sm:$0xff]
  %v38 = vld [vmem:[%s0 + $0x90] sm:$0xff]
  %v39 = vld [vmem:[%s0 + $0x98] sm:$0xff]
  %v40 = vld [vmem:[%s0 + $0xa0] sm:$0xff]
  %v41 = vld [vmem:[%s0 + $0xa8] sm:$0xff]
  %v42 = vld [vmem:[%s0 + $0xb0] sm:$0xff]
  %v43 = vld [vmem:[%s0 + $0xb8] sm:$0xff]
  %v44 = vld [vmem:[%s0 + $0xc0] sm:$0xff]
  %v45 = vld [vmem:[%s0 + $0xc8] sm:$0xff]
  %v46 = vld [vmem:[%s0 + $0xd0] sm:$0xff]
  %v47 = vld [vmem:[%s0 + $0xd8] sm:$0xff]
  %v48 = vld [vmem:[%s0 + $0xe0] sm:$0xff]
  %v49 = vld [vmem:[%s0 + $0xe8] sm:$0xff]
  %v50 = vld [vmem:[%s0 + $0xf0] sm:$0xff]
  %v51 = vld [vmem:[%s0 + $0xf8] sm:$0xff]
  %v52 = vld [vmem:[%s0 + $0x100] sm:$0xff]
  %v53 = vld [vmem:[%s0 + $0x108] sm:$0xff]
  %v54 = vld [vmem:[%s0 + $0x110] sm:$0xff]
  %v55 = vld [vmem:[%s0 + $0x118] sm:$0xff]
  %v56 = vld [vmem:[%s0 + $0x120] sm:$0xff]
  %v57 = vld [vmem:[%s0 + $0x128] sm:$0xff]
  %v58 = vld [vmem:[%s0 + $0x130] sm:$0xff]
  %v59 = vld [vmem:[%s0 + $0x138] sm:$0xff]
  %v60 = vld [vmem:[%s0 + $0x140] sm:$0xff]
  %v61 = vld [vmem:[%s0 + $0x148] sm:$0xff]
  %v62 = vld [vmem:[%s0 + $0x150] sm:$0xff]
  %v63 = vld [vmem:[%s0 + $0x158] sm:$0xff]
  %v64 = vld [vmem:[%s0 + $0x160] sm:$0xff]
  %v65 = vld [vmem:[%s0 + $0x168] sm:$0xff]
  %v66 = vld [vmem:[%s0 + $0x170] sm:$0xff]
  %v67 = vld [vmem:[%s0 + $0x178] sm:$0xff]
  %v68 = vld [vmem:[%s0 + $0x180] sm:$0xff]
  %v69 = vld [vmem:[%s0 + $0x188] sm:$0xff]
  %v70 = vld [vmem:[%s0 + $0x190] sm:$0xff]
  %v71 = vld [vmem:[%s0 + $0x198] sm:$0xff]
  %v72 = vld [vmem:[%s0 + $0x1a0] sm:$0xff]
  %v73 = vld [vmem:[%s0 + $0x1a8] sm:$0xff]
  %v74 = vld [vmem:[%s0 + $0x1b0] sm:$0xff]
  %v75 = vld [vmem:[%s0 + $0x1b8] sm:$0xff]
  %v76 = vld [vmem:[%s0 + $0x1c0] sm:$0xff]
  %v77 = vld [vmem:[%s0 + $0x1c8] sm:$0xff]
  %v78 = vld [vmem:[%s0 + $0x1d0] sm:$0xff]
  %v79 = vld [vmem:[%s0 + $0x1d8] sm:$0xff]
  %v80 = vld [vmem:[%s0 + $0x1e0] sm:$0xff]
  %v81 = vld [vmem:[%s0 + $0x1e8] sm:$0xff]
  %v82 = vld [vmem:[%s0 + $0x1f0] sm:$0xff]
  %v83 = vld [vmem:[%s0 + $0x1f8] sm:$0xff]
  %v84 = vld [vmem:[%s1] sm:$0xff]
  %v85 = vld [vmem:[%s1 + $0x8] sm:$0xff]
  %v86 = vld [vmem:[%s1 + $0x10] sm:$0xff]
  %v87 = vld [vmem:[%s1 + $0x18] sm:$0xff]
  %v88 = vld [vmem:[%s2] sm:$0x1]
  %v90 = vlaneseq
  %v91 = vshrl.u32 %v90, 7
  %v92 = vsub.s32 0, %v91
  %v93 = vrot.slane %v88, %v92
  %vm95 = vcmask 261120
  %v97 = vsel %vm95, %v20, 0
  %v100 = vsel %vm95, %v21, 0
  %v103 = vsel %vm95, %v22, 0
  %v106 = vsel %vm95, %v23, 0
  %v109 = vsel %vm95, %v24, 0
  %v112 = vsel %vm95, %v25, 0
  %v115 = vsel %vm95, %v26, 0
  %v118 = vsel %vm95, %v27, 0
  %v121 = vsel %vm95, %v28, 0
  %v124 = vsel %vm95, %v29, 0
  %v127 = vsel %vm95, %v30, 0
  %v130 = vsel %vm95, %v31, 0
  %v133 = vsel %vm95, %v32, 0
  %v136 = vsel %vm95, %v33, 0
  %v139 = vsel %vm95, %v34, 0
  %v142 = vsel %vm95, %v35, 0
  %v145 = vsel %vm95, %v36, 0
  %v148 = vsel %vm95, %v37, 0
  %v151 = vsel %vm95, %v38, 0
  %v154 = vsel %vm95, %v39, 0
  %v157 = vsel %vm95, %v40, 0
  %v160 = vsel %vm95, %v41, 0
  %v163 = vsel %vm95, %v42, 0
  %v166 = vsel %vm95, %v43, 0
  %v169 = vsel %vm95, %v44, 0
  %v172 = vsel %vm95, %v45, 0
  %v175 = vsel %vm95, %v46, 0
  %v178 = vsel %vm95, %v47, 0
  %v181 = vsel %vm95, %v48, 0
  %v184 = vsel %vm95, %v49, 0
  %v187 = vsel %vm95, %v50, 0
  %v190 = vsel %vm95, %v51, 0
  %v193 = vsel %vm95, %v52, 0
  %v196 = vsel %vm95, %v53, 0
  %v199 = vsel %vm95, %v54, 0
  %v202 = vsel %vm95, %v55, 0
  %v205 = vsel %vm95, %v56, 0
  %v208 = vsel %vm95, %v57, 0
  %v211 = vsel %vm95, %v58, 0
  %v214 = vsel %vm95, %v59, 0
  %v217 = vsel %vm95, %v60, 0
  %v220 = vsel %vm95, %v61, 0
  %v223 = vsel %vm95, %v62, 0
  %v226 = vsel %vm95, %v63, 0
  %v229 = vsel %vm95, %v64, 0
  %v232 = vsel %vm95, %v65, 0
  %v235 = vsel %vm95, %v66, 0
  %v238 = vsel %vm95, %v67, 0
  %v241 = vsel %vm95, %v68, 0
  %v244 = vsel %vm95, %v69, 0
  %v247 = vsel %vm95, %v70, 0
  %v250 = vsel %vm95, %v71, 0
  %v253 = vsel %vm95, %v72, 0
  %v256 = vsel %vm95, %v73, 0
  %v259 = vsel %vm95, %v74, 0
  %v262 = vsel %vm95, %v75, 0
  %v265 = vsel %vm95, %v76, 0
  %v268 = vsel %vm95, %v77, 0
  %v271 = vsel %vm95, %v78, 0
  %v274 = vsel %vm95, %v79, 0
  %v277 = vsel %vm95, %v80, 0
  %v280 = vsel %vm95, %v81, 0
  %v283 = vsel %vm95, %v82, 0
  %v286 = vsel %vm95, %v83, 0
  %288 = vmatprep.subr.mxu0 0.0
  %289 = vmatpush1.msra.mxu0 %v84
  %290 = vmatprep.subr.mxu0 0.0
  %291 = vmatpush1.msra.mxu0 %v85
  %292 = vmatprep.subr.mxu0 0.0
  %293 = vmatpush1.msra.mxu0 %v86
  %294 = vmatprep.subr.mxu0 0.0
  %295 = vmatpush1.msra.mxu0 %v87
  %296 = vmatprep.subr.mxu0 0.0
  %297 = vmatpush1.msra.mxu0 0.0
  %298 = vmatprep.subr.mxu0 0.0
  %299 = vmatpush1.msra.mxu0 0.0
  %300 = vmatprep.subr.mxu0 0.0
  %301 = vmatpush1.msra.mxu0 0.0
  %302 = vmatprep.subr.mxu0 0.0
  %303 = vmatpush1.msra.mxu0 0.0
  %304 = vmatprep.subr.mxu0 0.0
  %305 = vmatpush1.msra.mxu0 0.0
  %306 = vmatprep.subr.mxu0 0.0
  %307 = vmatpush1.msra.mxu0 0.0
  %308 = vmatprep.subr.mxu0 0.0
  %309 = vmatpush1.msra.mxu0 0.0
  %310 = vmatprep.subr.mxu0 0.0
  %311 = vmatpush1.msra.mxu0 0.0
  %312 = vmatprep.subr.mxu0 0.0
  %313 = vmatpush1.msra.mxu0 0.0
  %314 = vmatprep.subr.mxu0 0.0
  %315 = vmatpush1.msra.mxu0 0.0
  %316 = vmatprep.subr.mxu0 0.0
  %317 = vmatpush1.msra.mxu0 0.0
  %318 = vmatprep.subr.mxu0 0.0
  %319 = vmatpush1.msra.mxu0 0.0
  %320 = vmatprep.subr.mxu0 0.0
  %321 = vmatpush1.msra.mxu0 0.0
  %322 = vmatprep.subr.mxu0 0.0
  %323 = vmatpush1.msra.mxu0 0.0
  %324 = vmatprep.subr.mxu0 0.0
  %325 = vmatpush1.msra.mxu0 0.0
  %326 = vmatprep.subr.mxu0 0.0
  %327 = vmatpush1.msra.mxu0 0.0
  %328 = vmatprep.subr.mxu0 0.0
  %329 = vmatpush1.msra.mxu0 0.0
  %330 = vmatprep.subr.mxu0 0.0
  %331 = vmatpush1.msra.mxu0 0.0
  %332 = vmatprep.subr.mxu0 0.0
  %333 = vmatpush1.msra.mxu0 0.0
  %334 = vmatprep.subr.mxu0 0.0
  %335 = vmatpush1.msra.mxu0 0.0
  %336 = vmatprep.subr.mxu0 0.0
  %337 = vmatpush1.msra.mxu0 0.0
  %338 = vmatprep.subr.mxu0 0.0
  %339 = vmatpush1.msra.mxu0 0.0
  %340 = vmatprep.subr.mxu0 0.0
  %341 = vmatpush1.msra.mxu0 0.0
  %342 = vmatprep.subr.mxu0 0.0
  %343 = vmatpush1.msra.mxu0 0.0
  %344 = vmatprep.subr.mxu0 0.0
  %345 = vmatpush1.msra.mxu0 0.0
  %346 = vmatprep.subr.mxu0 0.0
  %347 = vmatpush1.msra.mxu0 0.0
  %348 = vmatprep.subr.mxu0 0.0
  %349 = vmatpush1.msra.mxu0 0.0
  %350 = vmatprep.subr.mxu0 0.0
  %351 = vmatpush1.msra.mxu0 0.0
  %352 = vmatprep.mubr.f32.mxu0 0.0
  %353 = vmatmul.mubr.f32.gmra.mrb[0].mxu0 %v97
  %v354 = vpop.f32.mrb[0].mxu0
  %v355 = vadd.f32 %v93, %v354
  %v356 = vpop.f32.mrb[0].mxu0
  %357 = vmatprep.mubr.f32.mxu0 0.0
  %358 = vmatmul.mubr.f32.gmra.mrb[0].mxu0 %v100
  %v359 = vpop.f32.mrb[0].mxu0
  %v360 = vadd.f32 %v93, %v359
  %v361 = vpop.f32.mrb[0].mxu0
  %362 = vmatprep.mubr.f32.mxu0 0.0
  %363 = vmatmul.mubr.f32.gmra.mrb[0].mxu0 %v103
  %v364 = vpop.f32.mrb[0].mxu0
  %v365 = vadd.f32 %v93, %v364
  %v366 = vpop.f32.mrb[0].mxu0
  %367 = vmatprep.mubr.f32.mxu0 0.0
  %368 = vmatmul.mubr.f32.gmra.mrb[0].mxu0 %v106
  %v369 = vpop.f32.mrb[0].mxu0
  %v370 = vadd.f32 %v93, %v369
  %v371 = vpop.f32.mrb[0].mxu0
  %372 = vmatprep.mubr.f32.mxu0 0.0
  %373 = vmatmul.mubr.f32.gmra.mrb[0].mxu0 %v109
  %v374 = vpop.f32.mrb[0].mxu0
  %v375 = vadd.f32 %v93, %v374
  %v376 = vpop.f32.mrb[0].mxu0
  %377 = vmatprep.mubr.f32.mxu0 0.0
  %378 = vmatmul.mubr.f32.gmra.mrb[0].mxu0 %v112
  %v379 = vpop.f32.mrb[0].mxu0
  %v380 = vadd.f32 %v93, %v379
  %v381 = vpop.f32.mrb[0].mxu0
  %382 = vmatprep.mubr.f32.mxu0 0.0
  %383 = vmatmul.mubr.f32.gmra.mrb[0].mxu0 %v115
  %v384 = vpop.f32.mrb[0].mxu0
  %v385 = vadd.f32 %v93, %v384
  %v386 = vpop.f32.mrb[0].mxu0
  %387 = vmatprep.mubr.f32.mxu0 0.0
  %388 = vmatmul.mubr.f32.gmra.mrb[0].mxu0 %v118
  %v389 = vpop.f32.mrb[0].mxu0
  %v390 = vadd.f32 %v93, %v389
  %v391 = vpop.f32.mrb[0].mxu0
  %392 = vmatprep.mubr.f32.mxu0 0.0
  %393 = vmatmul.mubr.f32.gmra.mrb[0].mxu0 %v121
  %v394 = vpop.f32.mrb[0].mxu0
  %v395 = vadd.f32 %v93, %v394
  %v396 = vpop.f32.mrb[0].mxu0
  %397 = vmatprep.mubr.f32.mxu0 0.0
  %398 = vmatmul.mubr.f32.gmra.mrb[0].mxu0 %v124
  %v399 = vpop.f32.mrb[0].mxu0
  %v400 = vadd.f32 %v93, %v399
  %v401 = vpop.f32.mrb[0].mxu0
  %402 = vmatprep.mubr.f32.mxu0 0.0
  %403 = vmatmul.mubr.f32.gmra.mrb[0].mxu0 %v127
  %v404 = vpop.f32.mrb[0].mxu0
  %v405 = vadd.f32 %v93, %v404
  %v406 = vpop.f32.mrb[0].mxu0
  %407 = vmatprep.mubr.f32.mxu0 0.0
  %408 = vmatmul.mubr.f32.gmra.mrb[0].mxu0 %v130
  %v409 = vpop.f32.mrb[0].mxu0
  %v410 = vadd.f32 %v93, %v409
  %v411 = vpop.f32.mrb[0].mxu0
  %412 = vmatprep.mubr.f32.mxu0 0.0
  %413 = vmatmul.mubr.f32.gmra.mrb[0].mxu0 %v133
  %v414 = vpop.f32.mrb[0].mxu0
  %v415 = vadd.f32 %v93, %v414
  %v416 = vpop.f32.mrb[0].mxu0
  %417 = vmatprep.mubr.f32.mxu0 0.0
  %418 = vmatmul.mubr.f32.gmra.mrb[0].mxu0 %v136
  %v419 = vpop.f32.mrb[0].mxu0
  %v420 = vadd.f32 %v93, %v419
  %v421 = vpop.f32.mrb[0].mxu0
  %422 = vmatprep.mubr.f32.mxu0 0.0
  %423 = vmatmul.mubr.f32.gmra.mrb[0].mxu0 %v139
  %v424 = vpop.f32.mrb[0].mxu0
  %v425 = vadd.f32 %v93, %v424
  %v426 = vpop.f32.mrb[0].mxu0
  %427 = vmatprep.mubr.f32.mxu0 0.0
  %428 = vmatmul.mubr.f32.gmra.mrb[0].mxu0 %v142
  %v429 = vpop.f32.mrb[0].mxu0
  %v430 = vadd.f32 %v93, %v429
  %v431 = vpop.f32.mrb[0].mxu0
  %432 = vmatprep.mubr.f32.mxu0 0.0
  %433 = vmatmul.mubr.f32.gmra.mrb[0].mxu0 %v145
  %v434 = vpop.f32.mrb[0].mxu0
  %v435 = vadd.f32 %v93, %v434
  %v436 = vpop.f32.mrb[0].mxu0
  %437 = vmatprep.mubr.f32.mxu0 0.0
  %438 = vmatmul.mubr.f32.gmra.mrb[0].mxu0 %v148
  %v439 = vpop.f32.mrb[0].mxu0
  %v440 = vadd.f32 %v93, %v439
  %v441 = vpop.f32.mrb[0].mxu0
  %442 = vmatprep.mubr.f32.mxu0 0.0
  %443 = vmatmul.mubr.f32.gmra.mrb[0].mxu0 %v151
  %v444 = vpop.f32.mrb[0].mxu0
  %v445 = vadd.f32 %v93, %v444
  %v446 = vpop.f32.mrb[0].mxu0
  %447 = vmatprep.mubr.f32.mxu0 0.0
  %448 = vmatmul.mubr.f32.gmra.mrb[0].mxu0 %v154
  %v449 = vpop.f32.mrb[0].mxu0
  %v450 = vadd.f32 %v93, %v449
  %v451 = vpop.f32.mrb[0].mxu0
  %452 = vmatprep.mubr.f32.mxu0 0.0
  %453 = vmatmul.mubr.f32.gmra.mrb[0].mxu0 %v157
  %v454 = vpop.f32.mrb[0].mxu0
  %v455 = vadd.f32 %v93, %v454
  %v456 = vpop.f32.mrb[0].mxu0
  %457 = vmatprep.mubr.f32.mxu0 0.0
  %458 = vmatmul.mubr.f32.gmra.mrb[0].mxu0 %v160
  %v459 = vpop.f32.mrb[0].mxu0
  %v460 = vadd.f32 %v93, %v459
  %v461 = vpop.f32.mrb[0].mxu0
  %462 = vmatprep.mubr.f32.mxu0 0.0
  %463 = vmatmul.mubr.f32.gmra.mrb[0].mxu0 %v163
  %v464 = vpop.f32.mrb[0].mxu0
  %v465 = vadd.f32 %v93, %v464
  %v466 = vpop.f32.mrb[0].mxu0
  %467 = vmatprep.mubr.f32.mxu0 0.0
  %468 = vmatmul.mubr.f32.gmra.mrb[0].mxu0 %v166
  %v469 = vpop.f32.mrb[0].mxu0
  %v470 = vadd.f32 %v93, %v469
  %v471 = vpop.f32.mrb[0].mxu0
  %472 = vmatprep.mubr.f32.mxu0 0.0
  %473 = vmatmul.mubr.f32.gmra.mrb[0].mxu0 %v169
  %v474 = vpop.f32.mrb[0].mxu0
  %v475 = vadd.f32 %v93, %v474
  %v476 = vpop.f32.mrb[0].mxu0
  %477 = vmatprep.mubr.f32.mxu0 0.0
  %478 = vmatmul.mubr.f32.gmra.mrb[0].mxu0 %v172
  %v479 = vpop.f32.mrb[0].mxu0
  %v480 = vadd.f32 %v93, %v479
  %v481 = vpop.f32.mrb[0].mxu0
  %482 = vmatprep.mubr.f32.mxu0 0.0
  %483 = vmatmul.mubr.f32.gmra.mrb[0].mxu0 %v175
  %v484 = vpop.f32.mrb[0].mxu0
  %v485 = vadd.f32 %v93, %v484
  %v486 = vpop.f32.mrb[0].mxu0
  %487 = vmatprep.mubr.f32.mxu0 0.0
  %488 = vmatmul.mubr.f32.gmra.mrb[0].mxu0 %v178
  %v489 = vpop.f32.mrb[0].mxu0
  %v490 = vadd.f32 %v93, %v489
  %v491 = vpop.f32.mrb[0].mxu0
  %492 = vmatprep.mubr.f32.mxu0 0.0
  %493 = vmatmul.mubr.f32.gmra.mrb[0].mxu0 %v181
  %v494 = vpop.f32.mrb[0].mxu0
  %v495 = vadd.f32 %v93, %v494
  %v496 = vpop.f32.mrb[0].mxu0
  %497 = vmatprep.mubr.f32.mxu0 0.0
  %498 = vmatmul.mubr.f32.gmra.mrb[0].mxu0 %v184
  %v499 = vpop.f32.mrb[0].mxu0
  %v500 = vadd.f32 %v93, %v499
  %v501 = vpop.f32.mrb[0].mxu0
  %502 = vmatprep.mubr.f32.mxu0 0.0
  %503 = vmatmul.mubr.f32.gmra.mrb[0].mxu0 %v187
  %v504 = vpop.f32.mrb[0].mxu0
  %v505 = vadd.f32 %v93, %v504
  %v506 = vpop.f32.mrb[0].mxu0
  %507 = vmatprep.mubr.f32.mxu0 0.0
  %508 = vmatmul.mubr.f32.gmra.mrb[0].mxu0 %v190
  %v509 = vpop.f32.mrb[0].mxu0
  %v510 = vadd.f32 %v93, %v509
  %v511 = vpop.f32.mrb[0].mxu0
  %512 = vmatprep.mubr.f32.mxu0 0.0
  %513 = vmatmul.mubr.f32.gmra.mrb[0].mxu0 %v193
  %v514 = vpop.f32.mrb[0].mxu0
  %v515 = vadd.f32 %v93, %v514
  %v516 = vpop.f32.mrb[0].mxu0
  %517 = vmatprep.mubr.f32.mxu0 0.0
  %518 = vmatmul.mubr.f32.gmra.mrb[0].mxu0 %v196
  %v519 = vpop.f32.mrb[0].mxu0
  %v520 = vadd.f32 %v93, %v519
  %v521 = vpop.f32.mrb[0].mxu0
  %522 = vmatprep.mubr.f32.mxu0 0.0
  %523 = vmatmul.mubr.f32.gmra.mrb[0].mxu0 %v199
  %v524 = vpop.f32.mrb[0].mxu0
  %v525 = vadd.f32 %v93, %v524
  %v526 = vpop.f32.mrb[0].mxu0
  %527 = vmatprep.mubr.f32.mxu0 0.0
  %528 = vmatmul.mubr.f32.gmra.mrb[0].mxu0 %v202
  %v529 = vpop.f32.mrb[0].mxu0
  %v530 = vadd.f32 %v93, %v529
  %v531 = vpop.f32.mrb[0].mxu0
  %532 = vmatprep.mubr.f32.mxu0 0.0
  %533 = vmatmul.mubr.f32.gmra.mrb[0].mxu0 %v205
  %v534 = vpop.f32.mrb[0].mxu0
  %v535 = vadd.f32 %v93, %v534
  %v536 = vpop.f32.mrb[0].mxu0
  %537 = vmatprep.mubr.f32.mxu0 0.0
  %538 = vmatmul.mubr.f32.gmra.mrb[0].mxu0 %v208
  %v539 = vpop.f32.mrb[0].mxu0
  %v540 = vadd.f32 %v93, %v539
  %v541 = vpop.f32.mrb[0].mxu0
  %542 = vmatprep.mubr.f32.mxu0 0.0
  %543 = vmatmul.mubr.f32.gmra.mrb[0].mxu0 %v211
  %v544 = vpop.f32.mrb[0].mxu0
  %v545 = vadd.f32 %v93, %v544
  %v546 = vpop.f32.mrb[0].mxu0
  %547 = vmatprep.mubr.f32.mxu0 0.0
  %548 = vmatmul.mubr.f32.gmra.mrb[0].mxu0 %v214
  %v549 = vpop.f32.mrb[0].mxu0
  %v550 = vadd.f32 %v93, %v549
  %v551 = vpop.f32.mrb[0].mxu0
  %552 = vmatprep.mubr.f32.mxu0 0.0
  %553 = vmatmul.mubr.f32.gmra.mrb[0].mxu0 %v217
  %v554 = vpop.f32.mrb[0].mxu0
  %v555 = vadd.f32 %v93, %v554
  %v556 = vpop.f32.mrb[0].mxu0
  %557 = vmatprep.mubr.f32.mxu0 0.0
  %558 = vmatmul.mubr.f32.gmra.mrb[0].mxu0 %v220
  %v559 = vpop.f32.mrb[0].mxu0
  %v560 = vadd.f32 %v93, %v559
  %v561 = vpop.f32.mrb[0].mxu0
  %562 = vmatprep.mubr.f32.mxu0 0.0
  %563 = vmatmul.mubr.f32.gmra.mrb[0].mxu0 %v223
  %v564 = vpop.f32.mrb[0].mxu0
  %v565 = vadd.f32 %v93, %v564
  %v566 = vpop.f32.mrb[0].mxu0
  %567 = vmatprep.mubr.f32.mxu0 0.0
  %568 = vmatmul.mubr.f32.gmra.mrb[0].mxu0 %v226
  %v569 = vpop.f32.mrb[0].mxu0
  %v570 = vadd.f32 %v93, %v569
  %v571 = vpop.f32.mrb[0].mxu0
  %572 = vmatprep.mubr.f32.mxu0 0.0
  %573 = vmatmul.mubr.f32.gmra.mrb[0].mxu0 %v229
  %v574 = vpop.f32.mrb[0].mxu0
  %v575 = vadd.f32 %v93, %v574
  %v576 = vpop.f32.mrb[0].mxu0
  %577 = vmatprep.mubr.f32.mxu0 0.0
  %578 = vmatmul.mubr.f32.gmra.mrb[0].mxu0 %v232
  %v579 = vpop.f32.mrb[0].mxu0
  %v580 = vadd.f32 %v93, %v579
  %v581 = vpop.f32.mrb[0].mxu0
  %582 = vmatprep.mubr.f32.mxu0 0.0
  %583 = vmatmul.mubr.f32.gmra.mrb[0].mxu0 %v235
  %v584 = vpop.f32.mrb[0].mxu0
  %v585 = vadd.f32 %v93, %v584
  %v586 = vpop.f32.mrb[0].mxu0
  %587 = vmatprep.mubr.f32.mxu0 0.0
  %588 = vmatmul.mubr.f32.gmra.mrb[0].mxu0 %v238
  %v589 = vpop.f32.mrb[0].mxu0
  %v590 = vadd.f32 %v93, %v589
  %v591 = vpop.f32.mrb[0].mxu0
  %592 = vmatprep.mubr.f32.mxu0 0.0
  %593 = vmatmul.mubr.f32.gmra.mrb[0].mxu0 %v241
  %v594 = vpop.f32.mrb[0].mxu0
  %v595 = vadd.f32 %v93, %v594
  %v596 = vpop.f32.mrb[0].mxu0
  %597 = vmatprep.mubr.f32.mxu0 0.0
  %598 = vmatmul.mubr.f32.gmra.mrb[0].mxu0 %v244
  %v599 = vpop.f32.mrb[0].mxu0
  %v600 = vadd.f32 %v93, %v599
  %v601 = vpop.f32.mrb[0].mxu0
  %602 = vmatprep.mubr.f32.mxu0 0.0
  %603 = vmatmul.mubr.f32.gmra.mrb[0].mxu0 %v247
  %v604 = vpop.f32.mrb[0].mxu0
  %v605 = vadd.f32 %v93, %v604
  %v606 = vpop.f32.mrb[0].mxu0
  %607 = vmatprep.mubr.f32.mxu0 0.0
  %608 = vmatmul.mubr.f32.gmra.mrb[0].mxu0 %v250
  %v609 = vpop.f32.mrb[0].mxu0
  %v610 = vadd.f32 %v93, %v609
  %v611 = vpop.f32.mrb[0].mxu0
  %612 = vmatprep.mubr.f32.mxu0 0.0
  %613 = vmatmul.mubr.f32.gmra.mrb[0].mxu0 %v253
  %v614 = vpop.f32.mrb[0].mxu0
  %v615 = vadd.f32 %v93, %v614
  %v616 = vpop.f32.mrb[0].mxu0
  %617 = vmatprep.mubr.f32.mxu0 0.0
  %618 = vmatmul.mubr.f32.gmra.mrb[0].mxu0 %v256
  %v619 = vpop.f32.mrb[0].mxu0
  %v620 = vadd.f32 %v93, %v619
  %v621 = vpop.f32.mrb[0].mxu0
  %622 = vmatprep.mubr.f32.mxu0 0.0
  %623 = vmatmul.mubr.f32.gmra.mrb[0].mxu0 %v259
  %v624 = vpop.f32.mrb[0].mxu0
  %v625 = vadd.f32 %v93, %v624
  %v626 = vpop.f32.mrb[0].mxu0
  %627 = vmatprep.mubr.f32.mxu0 0.0
  %628 = vmatmul.mubr.f32.gmra.mrb[0].mxu0 %v262
  %v629 = vpop.f32.mrb[0].mxu0
  %v630 = vadd.f32 %v93, %v629
  %v631 = vpop.f32.mrb[0].mxu0
  %632 = vmatprep.mubr.f32.mxu0 0.0
  %633 = vmatmul.mubr.f32.gmra.mrb[0].mxu0 %v265
  %v634 = vpop.f32.mrb[0].mxu0
  %v635 = vadd.f32 %v93, %v634
  %v636 = vpop.f32.mrb[0].mxu0
  %637 = vmatprep.mubr.f32.mxu0 0.0
  %638 = vmatmul.mubr.f32.gmra.mrb[0].mxu0 %v268
  %v639 = vpop.f32.mrb[0].mxu0
  %v640 = vadd.f32 %v93, %v639
  %v641 = vpop.f32.mrb[0].mxu0
  %642 = vmatprep.mubr.f32.mxu0 0.0
  %643 = vmatmul.mubr.f32.gmra.mrb[0].mxu0 %v271
  %v644 = vpop.f32.mrb[0].mxu0
  %v645 = vadd.f32 %v93, %v644
  %v646 = vpop.f32.mrb[0].mxu0
  %647 = vmatprep.mubr.f32.mxu0 0.0
  %648 = vmatmul.mubr.f32.gmra.mrb[0].mxu0 %v274
  %v649 = vpop.f32.mrb[0].mxu0
  %v650 = vadd.f32 %v93, %v649
  %v651 = vpop.f32.mrb[0].mxu0
  %652 = vmatprep.mubr.f32.mxu0 0.0
  %653 = vmatmul.mubr.f32.gmra.mrb[0].mxu0 %v277
  %v654 = vpop.f32.mrb[0].mxu0
  %v655 = vadd.f32 %v93, %v654
  %v656 = vpop.f32.mrb[0].mxu0
  %657 = vmatprep.mubr.f32.mxu0 0.0
  %658 = vmatmul.mubr.f32.gmra.mrb[0].mxu0 %v280
  %v659 = vpop.f32.mrb[0].mxu0
  %v660 = vadd.f32 %v93, %v659
  %v661 = vpop.f32.mrb[0].mxu0
  %662 = vmatprep.mubr.f32.mxu0 0.0
  %663 = vmatmul.mubr.f32.gmra.mrb[0].mxu0 %v283
  %v664 = vpop.f32.mrb[0].mxu0
  %v665 = vadd.f32 %v93, %v664
  %v666 = vpop.f32.mrb[0].mxu0
  %667 = vmatprep.mubr.f32.mxu0 0.0
  %668 = vmatmul.mubr.f32.gmra.mrb[0].mxu0 %v286
  %v669 = vpop.f32.mrb[0].mxu0
  %v670 = vadd.f32 %v93, %v669
  %v671 = vpop.f32.mrb[0].mxu0
  %672 = vdwg.mxu0
  %v673 = vmax.f32 %v355, 0.0
  %v674 = vmax.f32 %v360, 0.0
  %v675 = vmax.f32 %v365, 0.0
  %v676 = vmax.f32 %v370, 0.0
  %v677 = vmax.f32 %v375, 0.0
  %v678 = vmax.f32 %v380, 0.0
  %v679 = vmax.f32 %v385, 0.0
  %v680 = vmax.f32 %v390, 0.0
  %v681 = vmax.f32 %v395, 0.0
  %v682 = vmax.f32 %v400, 0.0
  %v683 = vmax.f32 %v405, 0.0
  %v684 = vmax.f32 %v410, 0.0
  %v685 = vmax.f32 %v415, 0.0
  %v686 = vmax.f32 %v420, 0.0
  %v687 = vmax.f32 %v425, 0.0
  %v688 = vmax.f32 %v430, 0.0
  %v689 = vmax.f32 %v435, 0.0
  %v690 = vmax.f32 %v440, 0.0
  %v691 = vmax.f32 %v445, 0.0
  %v692 = vmax.f32 %v450, 0.0
  %v693 = vmax.f32 %v455, 0.0
  %v694 = vmax.f32 %v460, 0.0
  %v695 = vmax.f32 %v465, 0.0
  %v696 = vmax.f32 %v470, 0.0
  %v697 = vmax.f32 %v475, 0.0
  %v698 = vmax.f32 %v480, 0.0
  %v699 = vmax.f32 %v485, 0.0
  %v700 = vmax.f32 %v490, 0.0
  %v701 = vmax.f32 %v495, 0.0
  %v702 = vmax.f32 %v500, 0.0
  %v703 = vmax.f32 %v505, 0.0
  %v704 = vmax.f32 %v510, 0.0
  %v705 = vmax.f32 %v515, 0.0
  %v706 = vmax.f32 %v520, 0.0
  %v707 = vmax.f32 %v525, 0.0
  %v708 = vmax.f32 %v530, 0.0
  %v709 = vmax.f32 %v535, 0.0
  %v710 = vmax.f32 %v540, 0.0
  %v711 = vmax.f32 %v545, 0.0
  %v712 = vmax.f32 %v550, 0.0
  %v713 = vmax.f32 %v555, 0.0
  %v714 = vmax.f32 %v560, 0.0
  %v715 = vmax.f32 %v565, 0.0
  %v716 = vmax.f32 %v570, 0.0
  %v717 = vmax.f32 %v575, 0.0
  %v718 = vmax.f32 %v580, 0.0
  %v719 = vmax.f32 %v585, 0.0
  %v720 = vmax.f32 %v590, 0.0
  %v721 = vmax.f32 %v595, 0.0
  %v722 = vmax.f32 %v600, 0.0
  %v723 = vmax.f32 %v605, 0.0
  %v724 = vmax.f32 %v610, 0.0
  %v725 = vmax.f32 %v615, 0.0
  %v726 = vmax.f32 %v620, 0.0
  %v727 = vmax.f32 %v625, 0.0
  %v728 = vmax.f32 %v630, 0.0
  %v729 = vmax.f32 %v635, 0.0
  %v730 = vmax.f32 %v640, 0.0
  %v731 = vmax.f32 %v645, 0.0
  %v732 = vmax.f32 %v650, 0.0
  %v733 = vmax.f32 %v655, 0.0
  %v734 = vmax.f32 %v660, 0.0
  %v735 = vmax.f32 %v665, 0.0
  %v736 = vmax.f32 %v670, 0.0
  %v737 = vld [vmem:[%s3] sm:$0xff]
  %v738 = vld [vmem:[%s3 + $0x8] sm:$0xff]
  %v739 = vld [vmem:[%s3 + $0x10] sm:$0xff]
  %v740 = vld [vmem:[%s3 + $0x18] sm:$0xff]
  %v741 = vld [vmem:[%s3 + $0x20] sm:$0xff]
  %v742 = vld [vmem:[%s3 + $0x28] sm:$0xff]
  %v743 = vld [vmem:[%s3 + $0x30] sm:$0xff]
  %v744 = vld [vmem:[%s3 + $0x38] sm:$0xff]
  %v745 = vld [vmem:[%s4] sm:$0x1]
  %v747 = vlaneseq
  %v748 = vshrl.u32 %v747, 7
  %v749 = vsub.s32 0, %v748
  %v750 = vrot.slane %v745, %v749
  %vm752 = vcmask 523264
  %v754 = vsel %vm752, %v673, 0
  %v757 = vsel %vm752, %v674, 0
  %v760 = vsel %vm752, %v675, 0
  %v763 = vsel %vm752, %v676, 0
  %v766 = vsel %vm752, %v677, 0
  %v769 = vsel %vm752, %v678, 0
  %v772 = vsel %vm752, %v679, 0
  %v775 = vsel %vm752, %v680, 0
  %v778 = vsel %vm752, %v681, 0
  %v781 = vsel %vm752, %v682, 0
  %v784 = vsel %vm752, %v683, 0
  %v787 = vsel %vm752, %v684, 0
  %v790 = vsel %vm752, %v685, 0
  %v793 = vsel %vm752, %v686, 0
  %v796 = vsel %vm752, %v687, 0
  %v799 = vsel %vm752, %v688, 0
  %v802 = vsel %vm752, %v689, 0
  %v805 = vsel %vm752, %v690, 0
  %v808 = vsel %vm752, %v691, 0
  %v811 = vsel %vm752, %v692, 0
  %v814 = vsel %vm752, %v693, 0
  %v817 = vsel %vm752, %v694, 0
  %v820 = vsel %vm752, %v695, 0
  %v823 = vsel %vm752, %v696, 0
  %v826 = vsel %vm752, %v697, 0
  %v829 = vsel %vm752, %v698, 0
  %v832 = vsel %vm752, %v699, 0
  %v835 = vsel %vm752, %v700, 0
  %v838 = vsel %vm752, %v701, 0
  %v841 = vsel %vm752, %v702, 0
  %v844 = vsel %vm752, %v703, 0
  %v847 = vsel %vm752, %v704, 0
  %v850 = vsel %vm752, %v705, 0
  %v853 = vsel %vm752, %v706, 0
  %v856 = vsel %vm752, %v707, 0
  %v859 = vsel %vm752, %v708, 0
  %v862 = vsel %vm752, %v709, 0
  %v865 = vsel %vm752, %v710, 0
  %v868 = vsel %vm752, %v711, 0
  %v871 = vsel %vm752, %v712, 0
  %v874 = vsel %vm752, %v713, 0
  %v877 = vsel %vm752, %v714, 0
  %v880 = vsel %vm752, %v715, 0
  %v883 = vsel %vm752, %v716, 0
  %v886 = vsel %vm752, %v717, 0
  %v889 = vsel %vm752, %v718, 0
  %v892 = vsel %vm752, %v719, 0
  %v895 = vsel %vm752, %v720, 0
  %v898 = vsel %vm752, %v721, 0
  %v901 = vsel %vm752, %v722, 0
  %v904 = vsel %vm752, %v723, 0
  %v907 = vsel %vm752, %v724, 0
  %v910 = vsel %vm752, %v725, 0
  %v913 = vsel %vm752, %v726, 0
  %v916 = vsel %vm752, %v727, 0
  %v919 = vsel %vm752, %v728, 0
  %v922 = vsel %vm752, %v729, 0
  %v925 = vsel %vm752, %v730, 0
  %v928 = vsel %vm752, %v731, 0
  %v931 = vsel %vm752, %v732, 0
  %v934 = vsel %vm752, %v733, 0
  %v937 = vsel %vm752, %v734, 0
  %v940 = vsel %vm752, %v735, 0
  %v943 = vsel %vm752, %v736, 0
  %945 = vmatprep.subr.mxu0 0.0
  %946 = vmatpush1.msra.mxu0 %v737
  %947 = vmatprep.subr.mxu0 0.0
  %948 = vmatpush1.msra.mxu0 %v738
  %949 = vmatprep.subr.mxu0 0.0
  %950 = vmatpush1.msra.mxu0 %v739
  %951 = vmatprep.subr.mxu0 0.0
  %952 = vmatpush1.msra.mxu0 %v740
  %953 = vmatprep.subr.mxu0 0.0
  %954 = vmatpush1.msra.mxu0 %v741
  %955 = vmatprep.subr.mxu0 0.0
  %956 = vmatpush1.msra.mxu0 %v742
  %957 = vmatprep.subr.mxu0 0.0
  %958 = vmatpush1.msra.mxu0 %v743
  %959 = vmatprep.subr.mxu0 0.0
  %960 = vmatpush1.msra.mxu0 %v744
  %961 = vmatprep.subr.mxu0 0.0
  %962 = vmatpush1.msra.mxu0 0.0
  %963 = vmatprep.subr.mxu0 0.0
  %964 = vmatpush1.msra.mxu0 0.0
  %965 = vmatprep.subr.mxu0 0.0
  %966 = vmatpush1.msra.mxu0 0.0
  %967 = vmatprep.subr.mxu0 0.0
  %968 = vmatpush1.msra.mxu0 0.0
  %969 = vmatprep.subr.mxu0 0.0
  %970 = vmatpush1.msra.mxu0 0.0
  %971 = vmatprep.subr.mxu0 0.0
  %972 = vmatpush1.msra.mxu0 0.0
  %973 = vmatprep.subr.mxu0 0.0
  %974 = vmatpush1.msra.mxu0 0.0
  %975 = vmatprep.subr.mxu0 0.0
  %976 = vmatpush1.msra.mxu0 0.0
  %977 = vmatprep.subr.mxu0 0.0
  %978 = vmatpush1.msra.mxu0 0.0
  %979 = vmatprep.subr.mxu0 0.0
  %980 = vmatpush1.msra.mxu0 0.0
  %981 = vmatprep.subr.mxu0 0.0
  %982 = vmatpush1.msra.mxu0 0.0
  %983 = vmatprep.subr.mxu0 0.0
  %984 = vmatpush1.msra.mxu0 0.0
  %985 = vmatprep.subr.mxu0 0.0
  %986 = vmatpush1.msra.mxu0 0.0
  %987 = vmatprep.subr.mxu0 0.0
  %988 = vmatpush1.msra.mxu0 0.0
  %989 = vmatprep.subr.mxu0 0.0
  %990 = vmatpush1.msra.mxu0 0.0
  %991 = vmatprep.subr.mxu0 0.0
  %992 = vmatpush1.msra.mxu0 0.0
  %993 = vmatprep.subr.mxu0 0.0
  %994 = vmatpush1.msra.mxu0 0.0
  %995 = vmatprep.subr.mxu0 0.0
  %996 = vmatpush1.msra.mxu0 0.0
  %997 = vmatprep.subr.mxu0 0.0
  %998 = vmatpush1.msra.mxu0 0.0
  %999 = vmatprep.subr.mxu0 0.0
  %1000 = vmatpush1.msra.mxu0 0.0
  %1001 = vmatprep.subr.mxu0 0.0
  %1002 = vmatpush1.msra.mxu0 0.0
  %1003 = vmatprep.subr.mxu0 0.0
  %1004 = vmatpush1.msra.mxu0 0.0
  %1005 = vmatprep.subr.mxu0 0.0
  %1006 = vmatpush1.msra.mxu0 0.0
  %1007 = vmatprep.subr.mxu0 0.0
  %1008 = vmatpush1.msra.mxu0 0.0
  %1009 = vmatprep.mubr.f32.mxu0 0.0
  %1010 = vmatmul.mubr.f32.gmra.mrb[0].mxu0 %v754
  %v1011 = vpop.f32.mrb[0].mxu0
  %v1012 = vadd.f32 %v750, %v1011
  %v1013 = vpop.f32.mrb[0].mxu0
  %1014 = vmatprep.mubr.f32.mxu0 0.0
  %1015 = vmatmul.mubr.f32.gmra.mrb[0].mxu0 %v757
  %v1016 = vpop.f32.mrb[0].mxu0
  %v1017 = vadd.f32 %v750, %v1016
  %v1018 = vpop.f32.mrb[0].mxu0
  %1019 = vmatprep.mubr.f32.mxu0 0.0
  %1020 = vmatmul.mubr.f32.gmra.mrb[0].mxu0 %v760
  %v1021 = vpop.f32.mrb[0].mxu0
  %v1022 = vadd.f32 %v750, %v1021
  %v1023 = vpop.f32.mrb[0].mxu0
  %1024 = vmatprep.mubr.f32.mxu0 0.0
  %1025 = vmatmul.mubr.f32.gmra.mrb[0].mxu0 %v763
  %v1026 = vpop.f32.mrb[0].mxu0
  %v1027 = vadd.f32 %v750, %v1026
  %v1028 = vpop.f32.mrb[0].mxu0
  %1029 = vmatprep.mubr.f32.mxu0 0.0
  %1030 = vmatmul.mubr.f32.gmra.mrb[0].mxu0 %v766
  %v1031 = vpop.f32.mrb[0].mxu0
  %v1032 = vadd.f32 %v750, %v1031
  %v1033 = vpop.f32.mrb[0].mxu0
  %1034 = vmatprep.mubr.f32.mxu0 0.0
  %1035 = vmatmul.mubr.f32.gmra.mrb[0].mxu0 %v769
  %v1036 = vpop.f32.mrb[0].mxu0
  %v1037 = vadd.f32 %v750, %v1036
  %v1038 = vpop.f32.mrb[0].mxu0
  %1039 = vmatprep.mubr.f32.mxu0 0.0
  %1040 = vmatmul.mubr.f32.gmra.mrb[0].mxu0 %v772
  %v1041 = vpop.f32.mrb[0].mxu0
  %v1042 = vadd.f32 %v750, %v1041
  %v1043 = vpop.f32.mrb[0].mxu0
  %1044 = vmatprep.mubr.f32.mxu0 0.0
  %1045 = vmatmul.mubr.f32.gmra.mrb[0].mxu0 %v775
  %v1046 = vpop.f32.mrb[0].mxu0
  %v1047 = vadd.f32 %v750, %v1046
  %v1048 = vpop.f32.mrb[0].mxu0
  %1049 = vmatprep.mubr.f32.mxu0 0.0
  %1050 = vmatmul.mubr.f32.gmra.mrb[0].mxu0 %v778
  %v1051 = vpop.f32.mrb[0].mxu0
  %v1052 = vadd.f32 %v750, %v1051
  %v1053 = vpop.f32.mrb[0].mxu0
  %1054 = vmatprep.mubr.f32.mxu0 0.0
  %1055 = vmatmul.mubr.f32.gmra.mrb[0].mxu0 %v781
  %v1056 = vpop.f32.mrb[0].mxu0
  %v1057 = vadd.f32 %v750, %v1056
  %v1058 = vpop.f32.mrb[0].mxu0
  %1059 = vmatprep.mubr.f32.mxu0 0.0
  %1060 = vmatmul.mubr.f32.gmra.mrb[0].mxu0 %v784
  %v1061 = vpop.f32.mrb[0].mxu0
  %v1062 = vadd.f32 %v750, %v1061
  %v1063 = vpop.f32.mrb[0].mxu0
  %1064 = vmatprep.mubr.f32.mxu0 0.0
  %1065 = vmatmul.mubr.f32.gmra.mrb[0].mxu0 %v787
  %v1066 = vpop.f32.mrb[0].mxu0
  %v1067 = vadd.f32 %v750, %v1066
  %v1068 = vpop.f32.mrb[0].mxu0
  %1069 = vmatprep.mubr.f32.mxu0 0.0
  %1070 = vmatmul.mubr.f32.gmra.mrb[0].mxu0 %v790
  %v1071 = vpop.f32.mrb[0].mxu0
  %v1072 = vadd.f32 %v750, %v1071
  %v1073 = vpop.f32.mrb[0].mxu0
  %1074 = vmatprep.mubr.f32.mxu0 0.0
  %1075 = vmatmul.mubr.f32.gmra.mrb[0].mxu0 %v793
  %v1076 = vpop.f32.mrb[0].mxu0
  %v1077 = vadd.f32 %v750, %v1076
  %v1078 = vpop.f32.mrb[0].mxu0
  %1079 = vmatprep.mubr.f32.mxu0 0.0
  %1080 = vmatmul.mubr.f32.gmra.mrb[0].mxu0 %v796
  %v1081 = vpop.f32.mrb[0].mxu0
  %v1082 = vadd.f32 %v750, %v1081
  %v1083 = vpop.f32.mrb[0].mxu0
  %1084 = vmatprep.mubr.f32.mxu0 0.0
  %1085 = vmatmul.mubr.f32.gmra.mrb[0].mxu0 %v799
  %v1086 = vpop.f32.mrb[0].mxu0
  %v1087 = vadd.f32 %v750, %v1086
  %v1088 = vpop.f32.mrb[0].mxu0
  %1089 = vmatprep.mubr.f32.mxu0 0.0
  %1090 = vmatmul.mubr.f32.gmra.mrb[0].mxu0 %v802
  %v1091 = vpop.f32.mrb[0].mxu0
  %v1092 = vadd.f32 %v750, %v1091
  %v1093 = vpop.f32.mrb[0].mxu0
  %1094 = vmatprep.mubr.f32.mxu0 0.0
  %1095 = vmatmul.mubr.f32.gmra.mrb[0].mxu0 %v805
  %v1096 = vpop.f32.mrb[0].mxu0
  %v1097 = vadd.f32 %v750, %v1096
  %v1098 = vpop.f32.mrb[0].mxu0
  %1099 = vmatprep.mubr.f32.mxu0 0.0
  %1100 = vmatmul.mubr.f32.gmra.mrb[0].mxu0 %v808
  %v1101 = vpop.f32.mrb[0].mxu0
  %v1102 = vadd.f32 %v750, %v1101
  %v1103 = vpop.f32.mrb[0].mxu0
  %1104 = vmatprep.mubr.f32.mxu0 0.0
  %1105 = vmatmul.mubr.f32.gmra.mrb[0].mxu0 %v811
  %v1106 = vpop.f32.mrb[0].mxu0
  %v1107 = vadd.f32 %v750, %v1106
  %v1108 = vpop.f32.mrb[0].mxu0
  %1109 = vmatprep.mubr.f32.mxu0 0.0
  %1110 = vmatmul.mubr.f32.gmra.mrb[0].mxu0 %v814
  %v1111 = vpop.f32.mrb[0].mxu0
  %v1112 = vadd.f32 %v750, %v1111
  %v1113 = vpop.f32.mrb[0].mxu0
  %1114 = vmatprep.mubr.f32.mxu0 0.0
  %1115 = vmatmul.mubr.f32.gmra.mrb[0].mxu0 %v817
  %v1116 = vpop.f32.mrb[0].mxu0
  %v1117 = vadd.f32 %v750, %v1116
  %v1118 = vpop.f32.mrb[0].mxu0
  %1119 = vmatprep.mubr.f32.mxu0 0.0
  %1120 = vmatmul.mubr.f32.gmra.mrb[0].mxu0 %v820
  %v1121 = vpop.f32.mrb[0].mxu0
  %v1122 = vadd.f32 %v750, %v1121
  %v1123 = vpop.f32.mrb[0].mxu0
  %1124 = vmatprep.mubr.f32.mxu0 0.0
  %1125 = vmatmul.mubr.f32.gmra.mrb[0].mxu0 %v823
  %v1126 = vpop.f32.mrb[0].mxu0
  %v1127 = vadd.f32 %v750, %v1126
  %v1128 = vpop.f32.mrb[0].mxu0
  %1129 = vmatprep.mubr.f32.mxu0 0.0
  %1130 = vmatmul.mubr.f32.gmra.mrb[0].mxu0 %v826
  %v1131 = vpop.f32.mrb[0].mxu0
  %v1132 = vadd.f32 %v750, %v1131
  %v1133 = vpop.f32.mrb[0].mxu0
  %1134 = vmatprep.mubr.f32.mxu0 0.0
  %1135 = vmatmul.mubr.f32.gmra.mrb[0].mxu0 %v829
  %v1136 = vpop.f32.mrb[0].mxu0
  %v1137 = vadd.f32 %v750, %v1136
  %v1138 = vpop.f32.mrb[0].mxu0
  %1139 = vmatprep.mubr.f32.mxu0 0.0
  %1140 = vmatmul.mubr.f32.gmra.mrb[0].mxu0 %v832
  %v1141 = vpop.f32.mrb[0].mxu0
  %v1142 = vadd.f32 %v750, %v1141
  %v1143 = vpop.f32.mrb[0].mxu0
  %1144 = vmatprep.mubr.f32.mxu0 0.0
  %1145 = vmatmul.mubr.f32.gmra.mrb[0].mxu0 %v835
  %v1146 = vpop.f32.mrb[0].mxu0
  %v1147 = vadd.f32 %v750, %v1146
  %v1148 = vpop.f32.mrb[0].mxu0
  %1149 = vmatprep.mubr.f32.mxu0 0.0
  %1150 = vmatmul.mubr.f32.gmra.mrb[0].mxu0 %v838
  %v1151 = vpop.f32.mrb[0].mxu0
  %v1152 = vadd.f32 %v750, %v1151
  %v1153 = vpop.f32.mrb[0].mxu0
  %1154 = vmatprep.mubr.f32.mxu0 0.0
  %1155 = vmatmul.mubr.f32.gmra.mrb[0].mxu0 %v841
  %v1156 = vpop.f32.mrb[0].mxu0
  %v1157 = vadd.f32 %v750, %v1156
  %v1158 = vpop.f32.mrb[0].mxu0
  %1159 = vmatprep.mubr.f32.mxu0 0.0
  %1160 = vmatmul.mubr.f32.gmra.mrb[0].mxu0 %v844
  %v1161 = vpop.f32.mrb[0].mxu0
  %v1162 = vadd.f32 %v750, %v1161
  %v1163 = vpop.f32.mrb[0].mxu0
  %1164 = vmatprep.mubr.f32.mxu0 0.0
  %1165 = vmatmul.mubr.f32.gmra.mrb[0].mxu0 %v847
  %v1166 = vpop.f32.mrb[0].mxu0
  %v1167 = vadd.f32 %v750, %v1166
  %v1168 = vpop.f32.mrb[0].mxu0
  %1169 = vmatprep.mubr.f32.mxu0 0.0
  %1170 = vmatmul.mubr.f32.gmra.mrb[0].mxu0 %v850
  %v1171 = vpop.f32.mrb[0].mxu0
  %v1172 = vadd.f32 %v750, %v1171
  %v1173 = vpop.f32.mrb[0].mxu0
  %1174 = vmatprep.mubr.f32.mxu0 0.0
  %1175 = vmatmul.mubr.f32.gmra.mrb[0].mxu0 %v853
  %v1176 = vpop.f32.mrb[0].mxu0
  %v1177 = vadd.f32 %v750, %v1176
  %v1178 = vpop.f32.mrb[0].mxu0
  %1179 = vmatprep.mubr.f32.mxu0 0.0
  %1180 = vmatmul.mubr.f32.gmra.mrb[0].mxu0 %v856
  %v1181 = vpop.f32.mrb[0].mxu0
  %v1182 = vadd.f32 %v750, %v1181
  %v1183 = vpop.f32.mrb[0].mxu0
  %1184 = vmatprep.mubr.f32.mxu0 0.0
  %1185 = vmatmul.mubr.f32.gmra.mrb[0].mxu0 %v859
  %v1186 = vpop.f32.mrb[0].mxu0
  %v1187 = vadd.f32 %v750, %v1186
  %v1188 = vpop.f32.mrb[0].mxu0
  %1189 = vmatprep.mubr.f32.mxu0 0.0
  %1190 = vmatmul.mubr.f32.gmra.mrb[0].mxu0 %v862
  %v1191 = vpop.f32.mrb[0].mxu0
  %v1192 = vadd.f32 %v750, %v1191
  %v1193 = vpop.f32.mrb[0].mxu0
  %1194 = vmatprep.mubr.f32.mxu0 0.0
  %1195 = vmatmul.mubr.f32.gmra.mrb[0].mxu0 %v865
  %v1196 = vpop.f32.mrb[0].mxu0
  %v1197 = vadd.f32 %v750, %v1196
  %v1198 = vpop.f32.mrb[0].mxu0
  %1199 = vmatprep.mubr.f32.mxu0 0.0
  %1200 = vmatmul.mubr.f32.gmra.mrb[0].mxu0 %v868
  %v1201 = vpop.f32.mrb[0].mxu0
  %v1202 = vadd.f32 %v750, %v1201
  %v1203 = vpop.f32.mrb[0].mxu0
  %1204 = vmatprep.mubr.f32.mxu0 0.0
  %1205 = vmatmul.mubr.f32.gmra.mrb[0].mxu0 %v871
  %v1206 = vpop.f32.mrb[0].mxu0
  %v1207 = vadd.f32 %v750, %v1206
  %v1208 = vpop.f32.mrb[0].mxu0
  %1209 = vmatprep.mubr.f32.mxu0 0.0
  %1210 = vmatmul.mubr.f32.gmra.mrb[0].mxu0 %v874
  %v1211 = vpop.f32.mrb[0].mxu0
  %v1212 = vadd.f32 %v750, %v1211
  %v1213 = vpop.f32.mrb[0].mxu0
  %1214 = vmatprep.mubr.f32.mxu0 0.0
  %1215 = vmatmul.mubr.f32.gmra.mrb[0].mxu0 %v877
  %v1216 = vpop.f32.mrb[0].mxu0
  %v1217 = vadd.f32 %v750, %v1216
  %v1218 = vpop.f32.mrb[0].mxu0
  %1219 = vmatprep.mubr.f32.mxu0 0.0
  %1220 = vmatmul.mubr.f32.gmra.mrb[0].mxu0 %v880
  %v1221 = vpop.f32.mrb[0].mxu0
  %v1222 = vadd.f32 %v750, %v1221
  %v1223 = vpop.f32.mrb[0].mxu0
  %1224 = vmatprep.mubr.f32.mxu0 0.0
  %1225 = vmatmul.mubr.f32.gmra.mrb[0].mxu0 %v883
  %v1226 = vpop.f32.mrb[0].mxu0
  %v1227 = vadd.f32 %v750, %v1226
  %v1228 = vpop.f32.mrb[0].mxu0
  %1229 = vmatprep.mubr.f32.mxu0 0.0
  %1230 = vmatmul.mubr.f32.gmra.mrb[0].mxu0 %v886
  %v1231 = vpop.f32.mrb[0].mxu0
  %v1232 = vadd.f32 %v750, %v1231
  %v1233 = vpop.f32.mrb[0].mxu0
  %1234 = vmatprep.mubr.f32.mxu0 0.0
  %1235 = vmatmul.mubr.f32.gmra.mrb[0].mxu0 %v889
  %v1236 = vpop.f32.mrb[0].mxu0
  %v1237 = vadd.f32 %v750, %v1236
  %v1238 = vpop.f32.mrb[0].mxu0
  %1239 = vmatprep.mubr.f32.mxu0 0.0
  %1240 = vmatmul.mubr.f32.gmra.mrb[0].mxu0 %v892
  %v1241 = vpop.f32.mrb[0].mxu0
  %v1242 = vadd.f32 %v750, %v1241
  %v1243 = vpop.f32.mrb[0].mxu0
  %1244 = vmatprep.mubr.f32.mxu0 0.0
  %1245 = vmatmul.mubr.f32.gmra.mrb[0].mxu0 %v895
  %v1246 = vpop.f32.mrb[0].mxu0
  %v1247 = vadd.f32 %v750, %v1246
  %v1248 = vpop.f32.mrb[0].mxu0
  %1249 = vmatprep.mubr.f32.mxu0 0.0
  %1250 = vmatmul.mubr.f32.gmra.mrb[0].mxu0 %v898
  %v1251 = vpop.f32.mrb[0].mxu0
  %v1252 = vadd.f32 %v750, %v1251
  %v1253 = vpop.f32.mrb[0].mxu0
  %1254 = vmatprep.mubr.f32.mxu0 0.0
  %1255 = vmatmul.mubr.f32.gmra.mrb[0].mxu0 %v901
  %v1256 = vpop.f32.mrb[0].mxu0
  %v1257 = vadd.f32 %v750, %v1256
  %v1258 = vpop.f32.mrb[0].mxu0
  %1259 = vmatprep.mubr.f32.mxu0 0.0
  %1260 = vmatmul.mubr.f32.gmra.mrb[0].mxu0 %v904
  %v1261 = vpop.f32.mrb[0].mxu0
  %v1262 = vadd.f32 %v750, %v1261
  %v1263 = vpop.f32.mrb[0].mxu0
  %1264 = vmatprep.mubr.f32.mxu0 0.0
  %1265 = vmatmul.mubr.f32.gmra.mrb[0].mxu0 %v907
  %v1266 = vpop.f32.mrb[0].mxu0
  %v1267 = vadd.f32 %v750, %v1266
  %v1268 = vpop.f32.mrb[0].mxu0
  %1269 = vmatprep.mubr.f32.mxu0 0.0
  %1270 = vmatmul.mubr.f32.gmra.mrb[0].mxu0 %v910
  %v1271 = vpop.f32.mrb[0].mxu0
  %v1272 = vadd.f32 %v750, %v1271
  %v1273 = vpop.f32.mrb[0].mxu0
  %1274 = vmatprep.mubr.f32.mxu0 0.0
  %1275 = vmatmul.mubr.f32.gmra.mrb[0].mxu0 %v913
  %v1276 = vpop.f32.mrb[0].mxu0
  %v1277 = vadd.f32 %v750, %v1276
  %v1278 = vpop.f32.mrb[0].mxu0
  %1279 = vmatprep.mubr.f32.mxu0 0.0
  %1280 = vmatmul.mubr.f32.gmra.mrb[0].mxu0 %v916
  %v1281 = vpop.f32.mrb[0].mxu0
  %v1282 = vadd.f32 %v750, %v1281
  %v1283 = vpop.f32.mrb[0].mxu0
  %1284 = vmatprep.mubr.f32.mxu0 0.0
  %1285 = vmatmul.mubr.f32.gmra.mrb[0].mxu0 %v919
  %v1286 = vpop.f32.mrb[0].mxu0
  %v1287 = vadd.f32 %v750, %v1286
  %v1288 = vpop.f32.mrb[0].mxu0
  %1289 = vmatprep.mubr.f32.mxu0 0.0
  %1290 = vmatmul.mubr.f32.gmra.mrb[0].mxu0 %v922
  %v1291 = vpop.f32.mrb[0].mxu0
  %v1292 = vadd.f32 %v750, %v1291
  %v1293 = vpop.f32.mrb[0].mxu0
  %1294 = vmatprep.mubr.f32.mxu0 0.0
  %1295 = vmatmul.mubr.f32.gmra.mrb[0].mxu0 %v925
  %v1296 = vpop.f32.mrb[0].mxu0
  %v1297 = vadd.f32 %v750, %v1296
  %v1298 = vpop.f32.mrb[0].mxu0
  %1299 = vmatprep.mubr.f32.mxu0 0.0
  %1300 = vmatmul.mubr.f32.gmra.mrb[0].mxu0 %v928
  %v1301 = vpop.f32.mrb[0].mxu0
  %v1302 = vadd.f32 %v750, %v1301
  %v1303 = vpop.f32.mrb[0].mxu0
  %1304 = vmatprep.mubr.f32.mxu0 0.0
  %1305 = vmatmul.mubr.f32.gmra.mrb[0].mxu0 %v931
  %v1306 = vpop.f32.mrb[0].mxu0
  %v1307 = vadd.f32 %v750, %v1306
  %v1308 = vpop.f32.mrb[0].mxu0
  %1309 = vmatprep.mubr.f32.mxu0 0.0
  %1310 = vmatmul.mubr.f32.gmra.mrb[0].mxu0 %v934
  %v1311 = vpop.f32.mrb[0].mxu0
  %v1312 = vadd.f32 %v750, %v1311
  %v1313 = vpop.f32.mrb[0].mxu0
  %1314 = vmatprep.mubr.f32.mxu0 0.0
  %1315 = vmatmul.mubr.f32.gmra.mrb[0].mxu0 %v937
  %v1316 = vpop.f32.mrb[0].mxu0
  %v1317 = vadd.f32 %v750, %v1316
  %v1318 = vpop.f32.mrb[0].mxu0
  %1319 = vmatprep.mubr.f32.mxu0 0.0
  %1320 = vmatmul.mubr.f32.gmra.mrb[0].mxu0 %v940
  %v1321 = vpop.f32.mrb[0].mxu0
  %v1322 = vadd.f32 %v750, %v1321
  %v1323 = vpop.f32.mrb[0].mxu0
  %1324 = vmatprep.mubr.f32.mxu0 0.0
  %1325 = vmatmul.mubr.f32.gmra.mrb[0].mxu0 %v943
  %v1326 = vpop.f32.mrb[0].mxu0
  %v1327 = vadd.f32 %v750, %v1326
  %v1328 = vpop.f32.mrb[0].mxu0
  %1329 = vdwg.mxu0
  %vm1330 = vcmask 130048
  %1331 = vst.msk [vmem:[%s5] sm:$0xff] %vm1330, %v1012
  %1332 = vst.msk [vmem:[%s5 + $0x8] sm:$0xff] %vm1330, %v1017
  %1333 = vst.msk [vmem:[%s5 + $0x10] sm:$0xff] %vm1330, %v1022
  %1334 = vst.msk [vmem:[%s5 + $0x18] sm:$0xff] %vm1330, %v1027
  %1335 = vst.msk [vmem:[%s5 + $0x20] sm:$0xff] %vm1330, %v1032
  %1336 = vst.msk [vmem:[%s5 + $0x28] sm:$0xff] %vm1330, %v1037
  %1337 = vst.msk [vmem:[%s5 + $0x30] sm:$0xff] %vm1330, %v1042
  %1338 = vst.msk [vmem:[%s5 + $0x38] sm:$0xff] %vm1330, %v1047
  %1339 = vst.msk [vmem:[%s5 + $0x40] sm:$0xff] %vm1330, %v1052
  %1340 = vst.msk [vmem:[%s5 + $0x48] sm:$0xff] %vm1330, %v1057
  %1341 = vst.msk [vmem:[%s5 + $0x50] sm:$0xff] %vm1330, %v1062
  %1342 = vst.msk [vmem:[%s5 + $0x58] sm:$0xff] %vm1330, %v1067
  %1343 = vst.msk [vmem:[%s5 + $0x60] sm:$0xff] %vm1330, %v1072
  %1344 = vst.msk [vmem:[%s5 + $0x68] sm:$0xff] %vm1330, %v1077
  %1345 = vst.msk [vmem:[%s5 + $0x70] sm:$0xff] %vm1330, %v1082
  %1346 = vst.msk [vmem:[%s5 + $0x78] sm:$0xff] %vm1330, %v1087
  %1347 = vst.msk [vmem:[%s5 + $0x80] sm:$0xff] %vm1330, %v1092
  %1348 = vst.msk [vmem:[%s5 + $0x88] sm:$0xff] %vm1330, %v1097
  %1349 = vst.msk [vmem:[%s5 + $0x90] sm:$0xff] %vm1330, %v1102
  %1350 = vst.msk [vmem:[%s5 + $0x98] sm:$0xff] %vm1330, %v1107
  %1351 = vst.msk [vmem:[%s5 + $0xa0] sm:$0xff] %vm1330, %v1112
  %1352 = vst.msk [vmem:[%s5 + $0xa8] sm:$0xff] %vm1330, %v1117
  %1353 = vst.msk [vmem:[%s5 + $0xb0] sm:$0xff] %vm1330, %v1122
  %1354 = vst.msk [vmem:[%s5 + $0xb8] sm:$0xff] %vm1330, %v1127
  %1355 = vst.msk [vmem:[%s5 + $0xc0] sm:$0xff] %vm1330, %v1132
  %1356 = vst.msk [vmem:[%s5 + $0xc8] sm:$0xff] %vm1330, %v1137
  %1357 = vst.msk [vmem:[%s5 + $0xd0] sm:$0xff] %vm1330, %v1142
  %1358 = vst.msk [vmem:[%s5 + $0xd8] sm:$0xff] %vm1330, %v1147
  %1359 = vst.msk [vmem:[%s5 + $0xe0] sm:$0xff] %vm1330, %v1152
  %1360 = vst.msk [vmem:[%s5 + $0xe8] sm:$0xff] %vm1330, %v1157
  %1361 = vst.msk [vmem:[%s5 + $0xf0] sm:$0xff] %vm1330, %v1162
  %1362 = vst.msk [vmem:[%s5 + $0xf8] sm:$0xff] %vm1330, %v1167
  %1363 = vst.msk [vmem:[%s5 + $0x100] sm:$0xff] %vm1330, %v1172
  %1364 = vst.msk [vmem:[%s5 + $0x108] sm:$0xff] %vm1330, %v1177
  %1365 = vst.msk [vmem:[%s5 + $0x110] sm:$0xff] %vm1330, %v1182
  %1366 = vst.msk [vmem:[%s5 + $0x118] sm:$0xff] %vm1330, %v1187
  %1367 = vst.msk [vmem:[%s5 + $0x120] sm:$0xff] %vm1330, %v1192
  %1368 = vst.msk [vmem:[%s5 + $0x128] sm:$0xff] %vm1330, %v1197
  %1369 = vst.msk [vmem:[%s5 + $0x130] sm:$0xff] %vm1330, %v1202
  %1370 = vst.msk [vmem:[%s5 + $0x138] sm:$0xff] %vm1330, %v1207
  %1371 = vst.msk [vmem:[%s5 + $0x140] sm:$0xff] %vm1330, %v1212
  %1372 = vst.msk [vmem:[%s5 + $0x148] sm:$0xff] %vm1330, %v1217
  %1373 = vst.msk [vmem:[%s5 + $0x150] sm:$0xff] %vm1330, %v1222
  %1374 = vst.msk [vmem:[%s5 + $0x158] sm:$0xff] %vm1330, %v1227
  %1375 = vst.msk [vmem:[%s5 + $0x160] sm:$0xff] %vm1330, %v1232
  %1376 = vst.msk [vmem:[%s5 + $0x168] sm:$0xff] %vm1330, %v1237
  %1377 = vst.msk [vmem:[%s5 + $0x170] sm:$0xff] %vm1330, %v1242
  %1378 = vst.msk [vmem:[%s5 + $0x178] sm:$0xff] %vm1330, %v1247
  %1379 = vst.msk [vmem:[%s5 + $0x180] sm:$0xff] %vm1330, %v1252
  %1380 = vst.msk [vmem:[%s5 + $0x188] sm:$0xff] %vm1330, %v1257
  %1381 = vst.msk [vmem:[%s5 + $0x190] sm:$0xff] %vm1330, %v1262
  %1382 = vst.msk [vmem:[%s5 + $0x198] sm:$0xff] %vm1330, %v1267
  %1383 = vst.msk [vmem:[%s5 + $0x1a0] sm:$0xff] %vm1330, %v1272
  %1384 = vst.msk [vmem:[%s5 + $0x1a8] sm:$0xff] %vm1330, %v1277
  %1385 = vst.msk [vmem:[%s5 + $0x1b0] sm:$0xff] %vm1330, %v1282
  %1386 = vst.msk [vmem:[%s5 + $0x1b8] sm:$0xff] %vm1330, %v1287
  %1387 = vst.msk [vmem:[%s5 + $0x1c0] sm:$0xff] %vm1330, %v1292
  %1388 = vst.msk [vmem:[%s5 + $0x1c8] sm:$0xff] %vm1330, %v1297
  %1389 = vst.msk [vmem:[%s5 + $0x1d0] sm:$0xff] %vm1330, %v1302
  %1390 = vst.msk [vmem:[%s5 + $0x1d8] sm:$0xff] %vm1330, %v1307
  %1391 = vst.msk [vmem:[%s5 + $0x1e0] sm:$0xff] %vm1330, %v1312
  %1392 = vst.msk [vmem:[%s5 + $0x1e8] sm:$0xff] %vm1330, %v1317
  %1393 = vst.msk [vmem:[%s5 + $0x1f0] sm:$0xff] %vm1330, %v1322
  %1394 = vst.msk [vmem:[%s5 + $0x1f8] sm:$0xff] %vm1330, %v1327
  // Predicated region
  $region22: #{tpu_custom_call.1} parent=0 // pred_check
    _
  $region23: #{tpu_custom_call.1} parent=0 // pred_check_branch
    %1396 = sbr.rel (0) target = $region25
  $region24: #{tpu_custom_call.1} parent=0 // pred_region
    _
  $region25: #{tpu_custom_call.1} parent=0 // pred_fallthru
    _
  // Predicated region
  $region26: #{tpu_custom_call.1} parent=0 // pred_check
    _
  $region27: #{tpu_custom_call.1} parent=0 // pred_check_branch
    %1398 = sbr.rel (0) target = $region29
  $region28: #{tpu_custom_call.1} parent=0 // pred_region
    _
  $region29: #{tpu_custom_call.1} parent=0 // pred_fallthru
    _

</llo_original>
